<compile_context>
chip_gen: v5e
topology: v5e:2x2
jax: 0.10.0
libtpu: 0.0.40
codegen_flags: <defaults>
</compile_context>

<pallas_src>
import functools

import jax
import jax.numpy as jnp
from jax.experimental import pallas as pl
from jax.experimental.pallas import tpu as pltpu

GAMMA = 2
ALPHA = 2
EPS = 1e-07

_LANES = 128
_SUBLANES = 8
_TILE = _SUBLANES * _LANES          # 1024 elements: alignment granularity
_MAX_BLK_ROWS = 4096                # 4096 x 128 f32 = 2 MiB per stream/block


def _focal_loss_kernel(x_ref, t_ref, o_ref, acc_ref, *,
                       gamma, alpha, eps, blk_rows, valid_rows_last):
    """Grid = (parallel cores, reduction steps).  acc_ref is one vreg."""
    s = pl.program_id(1)
    last_s = pl.num_programs(1) - 1

    @pl.when(s == 0)
    def _():
        acc_ref[...] = jnp.zeros_like(acc_ref)

    def _loss(x, t):
        logit = jax.nn.sigmoid(x)
        logit = jnp.clip(logit, eps, 1.0 - eps)
        one_m = 1.0 - logit
        if gamma == 2:                      # static Python branch
            pow_one_m = one_m * one_m       # VPU multiplies, no EUP pow
            pow_logit = logit * logit
        else:
            pow_one_m = one_m ** gamma
            pow_logit = logit ** gamma
        return (-t * jnp.log(logit) * pow_one_m * alpha
                - (1.0 - t) * jnp.log(one_m) * pow_logit)

    def _accumulate(rows):
        # `rows` is a static Python int, multiple of 8 -> aligned slice.
        x = x_ref[:rows, :].astype(jnp.float32)
        t = t_ref[:rows, :].astype(jnp.float32)
        loss = _loss(x, t)
        # Layout-preserving fold to one vreg, then accumulate.
        acc_ref[...] += loss.reshape(rows // _SUBLANES, _SUBLANES,
                                     _LANES).sum(axis=0)

    if valid_rows_last == blk_rows:
        # All blocks are full: single unmasked fast path.
        _accumulate(blk_rows)
    else:
        # Only the globally-last block is partial; its valid row count is
        # static, so it is a cheap static prefix slice (no iota / where).
        is_last_block = jnp.logical_and(
            pl.program_id(0) == pl.num_programs(0) - 1, s == last_s)

        @pl.when(jnp.logical_not(is_last_block))
        def _():
            _accumulate(blk_rows)

        @pl.when(is_last_block)
        def _():
            _accumulate(valid_rows_last)

    @pl.when(s == last_s)
    def _():
        o_ref[0, 0] = jnp.sum(acc_ref[...])


def _focal_loss_jnp(x, target, gamma=GAMMA, alpha=ALPHA, eps=EPS):
    """Pure-JAX focal loss (used for the tiny unaligned tail and as ref)."""
    x = x.astype(jnp.float32)
    t = target.astype(jnp.float32)
    logit = jax.nn.sigmoid(x)
    logit = jnp.clip(logit, eps, 1.0 - eps)
    loss = (-t * jnp.log(logit) * (1.0 - logit) ** gamma * alpha
            - (1.0 - t) * jnp.log(1.0 - logit) * logit ** gamma)
    return jnp.sum(loss)


def focal_loss(x, target, gamma=GAMMA, alpha=ALPHA, eps=EPS):
    """Sum-reduced focal loss matching the PyTorch module's forward()."""
    assert x.shape == target.shape
    n = x.size

    x_flat = x.reshape(-1)
    t_flat = target.reshape(-1)

    # 1024-aligned prefix goes through the kernel; the <=1023-element tail is
    # a tiny pure-JAX pass (avoids jnp.pad materializing full HBM copies).
    n_main = (n // _TILE) * _TILE
    rows_main = n_main // _LANES

    tail = _focal_loss_jnp(x_flat[n_main:], t_flat[n_main:],
                           gamma, alpha, eps) if n_main < n else None

    if rows_main == 0:
        # Input smaller than one tile: handled entirely by the tail pass.
        return tail

    if n_main == n:
        x2 = x_flat.reshape(rows_main, _LANES)
        t2 = t_flat.reshape(rows_main, _LANES)
    else:
        x2 = x_flat[:n_main].reshape(rows_main, _LANES)
        t2 = t_flat[:n_main].reshape(rows_main, _LANES)

    # Block sizing (rows_main is a multiple of 8, so blk_rows is too).
    blk_rows = min(_MAX_BLK_ROWS, rows_main)
    blocks_total = pl.cdiv(rows_main, blk_rows)

    # Try to make the block count even so both v7x TensorCores get equal work.
    if blocks_total > 1 and blocks_total % 2 == 1:
        target_blocks = blocks_total + 1
        blk_rows = -(-rows_main // target_blocks)             # ceil
        blk_rows = ((blk_rows + _SUBLANES - 1) // _SUBLANES) * _SUBLANES
        blocks_total = pl.cdiv(rows_main, blk_rows)

    valid_rows_last = rows_main - (blocks_total - 1) * blk_rows

    # Megacore split: leading "parallel" axis of size 2 when it divides evenly.
    num_cores = 2 if (blocks_total >= 2 and blocks_total % 2 == 0) else 1
    blocks_per_core = blocks_total // num_cores
    grid = (num_cores, blocks_per_core)

    in_spec = pl.BlockSpec((blk_rows, _LANES),
                           lambda p, s: (p * blocks_per_core + s, 0))
    out_spec = pl.BlockSpec((1, 1), lambda p, s: (p, 0),
                            memory_space=pltpu.SMEM)

    partials = pl.pallas_call(
        functools.partial(_focal_loss_kernel, gamma=gamma, alpha=alpha,
                          eps=eps, blk_rows=blk_rows,
                          valid_rows_last=valid_rows_last),
        out_shape=jax.ShapeDtypeStruct((num_cores, 1), jnp.float32),
        grid_spec=pltpu.PrefetchScalarGridSpec(
            num_scalar_prefetch=0,
            grid=grid,
            in_specs=[in_spec, in_spec],
            out_specs=out_spec,
            scratch_shapes=[pltpu.VMEM((_SUBLANES, _LANES), jnp.float32)],
        ),
        compiler_params=pltpu.CompilerParams(
            dimension_semantics=("parallel", "arbitrary")),
    )(x2, t2)

    total = jnp.sum(partials)
    if tail is not None:
        total = total + tail
    return total


if __name__ == "__main__":
    key = jax.random.PRNGKey(0)
    k1, k2 = jax.random.split(key)

    # NCHW-shaped logits and binary targets (synthetic).
    x = jax.random.normal(k1, (2, 4, 16, 16), dtype=jnp.float32)
    target = (jax.random.uniform(k2, (2, 4, 16, 16)) > 0.5).astype(jnp.float32)

    out = jax.block_until_ready(focal_loss(x, target))
    ref = jax.block_until_ready(_focal_loss_jnp(x, target))

    assert jnp.allclose(out, ref, rtol=1e-5, atol=1e-4), (out, ref)
    print("KERNEL_OK")
</pallas_src>

<mosaic_0001>
module attributes {stable_mosaic.version = 11 : i64} {
  func.func @_focal_loss_kernel(%arg0: i32, %arg1: i32, %arg2: memref<16x128xf32, #tpu.memory_space<vmem>>, %arg3: memref<16x128xf32, #tpu.memory_space<vmem>>, %arg4: memref<1x1xf32, #tpu.memory_space<smem>>, %arg5: memref<8x128xf32, #tpu.memory_space<vmem>>) attributes {dimension_semantics = [#tpu.dimension_semantics<parallel>, #tpu.dimension_semantics<arbitrary>], iteration_bounds = array<i64: 1, 1>, scalar_prefetch = 0 : i64, scratch_operands = 1 : i64, tpu.core_type = #tpu.core_type<tc>, window_params = [{transform_indices = @transform_0, window_bounds = array<i64: 16, 128>}, {transform_indices = @transform_1, window_bounds = array<i64: 16, 128>}, {transform_indices = @transform_2, window_bounds = array<i64: 1, 1>}]} {
    %c0_i32 = arith.constant 0 : i32
    %0 = arith.cmpi eq, %arg1, %c0_i32 : i32
    %1 = arith.extui %0 : i1 to i32
    %c0_i32_0 = arith.constant 0 : i32
    %2 = arith.cmpi ne, %1, %c0_i32_0 : i32
    scf.if %2 {
      %cst_17 = arith.constant 0.000000e+00 : f32
      %39 = vector.broadcast %cst_17 : f32 to vector<8x128xf32>
      %c0_18 = arith.constant 0 : index
      %c0_19 = arith.constant 0 : index
      %40 = vector.load %arg5[%c0_18, %c0_19] : memref<8x128xf32, #tpu.memory_space<vmem>>, vector<8x128xf32>
      tpu.vector_store %arg5[%c0_18, %c0_19], %39 {strides = array<i32>} : memref<8x128xf32, #tpu.memory_space<vmem>>, vector<8x128xf32>,
    } else {
    }
    %c0 = arith.constant 0 : index
    %c0_1 = arith.constant 0 : index
    %3 = vector.load %arg2[%c0, %c0_1] : memref<16x128xf32, #tpu.memory_space<vmem>>, vector<16x128xf32>
    %c0_2 = arith.constant 0 : index
    %c0_3 = arith.constant 0 : index
    %4 = vector.load %arg3[%c0_2, %c0_3] : memref<16x128xf32, #tpu.memory_space<vmem>>, vector<16x128xf32>
    %5 = arith.negf %3 : vector<16x128xf32>
    %6 = math.exp %5 : vector<16x128xf32>
    %cst = arith.constant 1.000000e+00 : f32
    %7 = vector.broadcast %cst : f32 to vector<16x128xf32>
    %8 = arith.addf %7, %6 : vector<16x128xf32>
    %9 = arith.divf %7, %8 : vector<16x128xf32>
    %cst_4 = arith.constant 1.000000e-07 : f32
    %cst_5 = arith.constant 0.99999988 : f32
    %10 = vector.broadcast %cst_4 : f32 to vector<16x128xf32>
    %11 = arith.maximumf %10, %9 : vector<16x128xf32>
    %12 = vector.broadcast %cst_5 : f32 to vector<16x128xf32>
    %13 = arith.minimumf %12, %11 : vector<16x128xf32>
    %cst_6 = arith.constant 1.000000e+00 : f32
    %14 = vector.broadcast %cst_6 : f32 to vector<16x128xf32>
    %15 = arith.subf %14, %13 : vector<16x128xf32>
    %16 = arith.mulf %15, %15 : vector<16x128xf32>
    %17 = arith.mulf %13, %13 : vector<16x128xf32>
    %cst_7 = arith.constant 0.000000e+00 : f32
    %18 = vector.broadcast %cst_7 : f32 to vector<16x128xf32>
    %19 = arith.subf %18, %4 : vector<16x128xf32>
    %20 = math.log %13 : vector<16x128xf32>
    %21 = arith.mulf %19, %20 : vector<16x128xf32>
    %22 = arith.mulf %21, %16 : vector<16x128xf32>
    %cst_8 = arith.constant 2.000000e+00 : f32
    %23 = vector.broadcast %cst_8 : f32 to vector<16x128xf32>
    %24 = arith.mulf %22, %23 : vector<16x128xf32>
    %cst_9 = arith.constant 1.000000e+00 : f32
    %25 = vector.broadcast %cst_9 : f32 to vector<16x128xf32>
    %26 = arith.subf %25, %4 : vector<16x128xf32>
    %27 = math.log %15 : vector<16x128xf32>
    %28 = arith.mulf %26, %27 : vector<16x128xf32>
    %29 = arith.mulf %28, %17 : vector<16x128xf32>
    %30 = arith.subf %24, %29 : vector<16x128xf32>
    %c0_10 = arith.constant 0 : index
    %c0_11 = arith.constant 0 : index
    %31 = vector.load %arg5[%c0_10, %c0_11] : memref<8x128xf32, #tpu.memory_space<vmem>>, vector<8x128xf32>
    %32 = vector.shape_cast %30 : vector<16x128xf32> to vector<2x8x128xf32>
    %cst_12 = arith.constant dense<0.000000e+00> : vector<8x128xf32>
    %33 = vector.multi_reduction <add>, %32, %cst_12 [0] : vector<2x8x128xf32> to vector<8x128xf32>
    %34 = arith.addf %31, %33 : vector<8x128xf32>
    %c0_13 = arith.constant 0 : index
    %c0_14 = arith.constant 0 : index
    %35 = vector.load %arg5[%c0_13, %c0_14] : memref<8x128xf32, #tpu.memory_space<vmem>>, vector<8x128xf32>
    tpu.vector_store %arg5[%c0_13, %c0_14], %34 {strides = array<i32>} : memref<8x128xf32, #tpu.memory_space<vmem>>, vector<8x128xf32>,
    %c0_i32_15 = arith.constant 0 : i32
    %36 = arith.cmpi eq, %arg1, %c0_i32_15 : i32
    %37 = arith.extui %36 : i1 to i32
    %c0_i32_16 = arith.constant 0 : i32
    %38 = arith.cmpi ne, %37, %c0_i32_16 : i32
    scf.if %38 {
      %c0_17 = arith.constant 0 : index
      %c0_18 = arith.constant 0 : index
      %39 = vector.load %arg5[%c0_17, %c0_18] : memref<8x128xf32, #tpu.memory_space<vmem>>, vector<8x128xf32>
      %40 = vector.shape_cast %39 : vector<8x128xf32> to vector<1x8x128xf32>
      %cst_19 = arith.constant dense<0.000000e+00> : vector<1xf32>
      %41 = vector.multi_reduction <add>, %40, %cst_19 [1, 2] : vector<1x8x128xf32> to vector<1xf32>
      %42 = vector.shape_cast %41 : vector<1xf32> to vector<1x1x1xf32>
      %43 = vector.extract %42[0, 0, 0] : f32 from vector<1x1x1xf32>
      %c0_20 = arith.constant 0 : index
      %c0_21 = arith.constant 0 : index
      %44 = memref.load %arg4[%c0_20, %c0_21] : memref<1x1xf32, #tpu.memory_space<smem>>
      memref.store %43, %arg4[%c0_20, %c0_21] : memref<1x1xf32, #tpu.memory_space<smem>>
    } else {
    }
    return
  }
  func.func @transform_0(%arg0: i32, %arg1: i32) -> (i32, i32) {
    %c1_i32 = arith.constant 1 : i32
    %0 = arith.muli %arg0, %c1_i32 : i32
    %1 = arith.addi %0, %arg1 : i32
    %c0_i32 = arith.constant 0 : i32
    %c0_i32_0 = arith.constant 0 : i32
    return %1, %c0_i32 : i32, i32
  }
  func.func @transform_1(%arg0: i32, %arg1: i32) -> (i32, i32) {
    %c1_i32 = arith.constant 1 : i32
    %0 = arith.muli %arg0, %c1_i32 : i32
    %1 = arith.addi %0, %arg1 : i32
    %c0_i32 = arith.constant 0 : i32
    %c0_i32_0 = arith.constant 0 : i32
    return %1, %c0_i32 : i32, i32
  }
  func.func @transform_2(%arg0: i32, %arg1: i32) -> (i32, i32) {
    %c0_i32 = arith.constant 0 : i32
    %c0_i32_0 = arith.constant 0 : i32
    return %arg0, %c0_i32 : i32, i32
  }
}

</mosaic_0001>

<llo_original>
// kernel: tpu_custom_call.1
$region0: #{tpu_custom_call.1}
  #allocation0 [shape = 'u32[]', space=smem, size = 0x4, offset = 0x4, fixed_abs, tag = 'smem constant byte address 0x4 - core index']
  #allocation1 [shape = 'u32[72,128]{1,0:T(1,128)}', space=vmem, size = 0x9000, scoped, tag = 'internal scratch']
  #allocation2 [shape = 'f32[8,128]{1,0:T(8,128)}', space=vmem, size = 0x1000, scoped, tag = 'scratch operand']
  %s0 = inlined_call_operand.hbm [shape: f32[16,128], index: 0, kind: input, shape index: {}]
  %s1 = inlined_call_operand.hbm [shape: f32[16,128], index: 1, kind: input, shape index: {}]
  %s2 = inlined_call_operand.hbm [shape: f32[1,1], index: 2, kind: output, shape index: {}]
  %s3 = sld [smem:[#allocation0]]
  $region34: #{tpu_custom_call.1} parent=0
    _
  %s5 = ssub.s32 1, %s3
  %s6 = scalar_select 0, %s5, %s3
  $region1: #{tpu_custom_call.1} parent=0
    #allocation3 [shape = 'u8[8192]{0}', space=vmem, size = 0x2000, scoped, tag = 'input window, operand 0, single buffered']
    #allocation4 [shape = 's32[1]{0}', space=sflag, size = 0x4, scoped, tag = 'scoped memory for tpu_custom_call.1']
    #allocation5 [shape = 's32[1]{0}', space=sflag, size = 0x4, scoped, tag = 'scoped memory for tpu_custom_call.1']
    #allocation6 [shape = 'u8[8192]{0}', space=vmem, size = 0x2000, scoped, tag = 'input window, operand 1, single buffered']
    #allocation7 [shape = 's32[1]{0}', space=sflag, size = 0x4, scoped, tag = 'scoped memory for tpu_custom_call.1']
    #allocation8 [shape = 'u8[512]{0}', space=smem, size = 0x200, scoped, tag = 'output window, operand 0, single buffered']
    %7 = vsyncpa [#allocation4], 0
    %8 = vsyncpa [#allocation7], 0
    %9 = vsyncpa [#allocation5], 0
    // Predicated region
    $region2: #{tpu_custom_call.1} parent=1 // pred_check
      _
    $region3: #{tpu_custom_call.1} parent=1 // pred_check_branch
      %11 = sbr.rel (0) target = $region5
    $region4: #{tpu_custom_call.1} parent=1 // pred_region
      %s12 = sadd.s32 0, 0
      %s13 = smul.u32 2, %s12
      %15 = vsyncadd [#allocation4], 0
      %s16 = smul.addr %s13, 8
      %s17 = scalar_lea.hbm %s0, %s16
      %s18 = sshll.u32 %s17, 4
      %s19 = int_to_ptr.hbm [resolvable:$true] %s18
      %s20 = sshll.u32 [#allocation3], 4
      %s21 = int_to_ptr.vmem [resolvable:$true] %s20
      %26 = dma.hbm_to_vmem [thread:$0]  %s19, 256, %s21, [#allocation4], 128, 128, 8
    $region5: #{tpu_custom_call.1} parent=1 // pred_fallthru
      _
    // Predicated region
    $region6: #{tpu_custom_call.1} parent=1 // pred_check
      _
    $region7: #{tpu_custom_call.1} parent=1 // pred_check_branch
      %28 = sbr.rel (0) target = $region9
    $region8: #{tpu_custom_call.1} parent=1 // pred_region
      %s29 = sadd.s32 0, 0
      %s30 = smul.u32 2, %s29
      %32 = vsyncadd [#allocation7], 0
      %s33 = smul.addr %s30, 8
      %s34 = scalar_lea.hbm %s1, %s33
      %s35 = sshll.u32 %s34, 4
      %s36 = int_to_ptr.hbm [resolvable:$true] %s35
      %s37 = sshll.u32 [#allocation6], 4
      %s38 = int_to_ptr.vmem [resolvable:$true] %s37
      %43 = dma.hbm_to_vmem [thread:$0]  %s36, 256, %s38, [#allocation7], 128, 128, 8
    $region9: #{tpu_custom_call.1} parent=1 // pred_fallthru
      _
    // Predicated region
    $region10: #{tpu_custom_call.1} parent=1 // pred_check
      _
    $region11: #{tpu_custom_call.1} parent=1 // pred_check_branch
      %45 = sbr.rel (0) target = $region13
    $region12: #{tpu_custom_call.1} parent=1 // pred_region
      %47 = dma.done [#allocation4], 256
    $region13: #{tpu_custom_call.1} parent=1 // pred_fallthru
      _
    // Predicated region
    $region14: #{tpu_custom_call.1} parent=1 // pred_check
      _
    $region15: #{tpu_custom_call.1} parent=1 // pred_check_branch
      %49 = sbr.rel (0) target = $region17
    $region16: #{tpu_custom_call.1} parent=1 // pred_region
      %51 = dma.done [#allocation7], 256
    $region17: #{tpu_custom_call.1} parent=1 // pred_fallthru
      _
    %s52 = sadd.s32 0, 0
    %s53 = smul.u32 2, %s52
    %s54 = sadd.s32 0, 0
    %s55 = smul.u32 2, %s54
    %p56 = scmp.eq.s32.totalorder 0, 0
    // Predicated region
    $region18: #{tpu_custom_call.1} parent=1 // pred_check
      %p57 = pneg %p56
    $region19: #{tpu_custom_call.1} parent=1 // pred_check_branch
      %59 = sbr.rel (%p57) target = $region21
    $region20: #{tpu_custom_call.1} parent=1 // pred_region
      %60 = vst [vmem:[#allocation2] sm:$0xff] 0.0
    $region21: #{tpu_custom_call.1} parent=1 // pred_fallthru
      _
    %v61 = vld [vmem:[#allocation3] sm:$0xff]
    %v62 = vld [vmem:[#allocation3 + $0x8] sm:$0xff]
    %v63 = vld [vmem:[#allocation6] sm:$0xff]
    %v64 = vld [vmem:[#allocation6 + $0x8] sm:$0xff]
    %v65 = vxor.u32 %v61, 2147483648
    %v66 = vxor.u32 %v62, 2147483648
    %v67 = vmul.f32 %v65, 1.442695
    %v68 = vpow.pop %v67
    %v69 = vmul.f32 %v66, 1.442695
    %v70 = vpow.pop %v69
    %v71 = vadd.f32 %v68, 1.0
    %v72 = vadd.f32 %v70, 1.0
    %v73 = vrcp.pop %v71
    %v74 = vmul.f32 %v71, %v73
    %v75 = vsub.f32 1.0, %v74
    %v76 = vmul.f32 %v73, %v75
    %v77 = vadd.f32 %v73, %v76
    %vm78 = vweird.f32 %v71
    %vm79 = vweird.f32 %v73
    %vm80 = vmor %vm78, %vm79
    %v81 = vsel %vm80, %v73, %v77
    %v82 = vand.u32 2147483647, %v71
    %vm83 = vcmp.eq.f32.partialorder %v82, 8.507059e+37
    %v84 = vand.u32 %v71, 2147483648
    %v85 = vor.u32 1.1754944e-38, %v84
    %v86 = vsel %vm83, %v85, %v81
    %v87 = vmul.f32 1.0, %v86
    %v88 = vrcp.pop %v72
    %v89 = vmul.f32 %v72, %v88
    %v90 = vsub.f32 1.0, %v89
    %v91 = vmul.f32 %v88, %v90
    %v92 = vadd.f32 %v88, %v91
    %vm93 = vweird.f32 %v72
    %vm94 = vweird.f32 %v88
    %vm95 = vmor %vm93, %vm94
    %v96 = vsel %vm95, %v88, %v92
    %v97 = vand.u32 2147483647, %v72
    %vm98 = vcmp.eq.f32.partialorder %v97, 8.507059e+37
    %v99 = vand.u32 %v72, 2147483648
    %v100 = vor.u32 1.1754944e-38, %v99
    %v101 = vsel %vm98, %v100, %v96
    %v102 = vmul.f32 1.0, %v101
    %v103 = vmax.f32 %v87, 1e-07
    %v104 = vmax.f32 %v102, 1e-07
    %v105 = vmin.f32 %v103, 0.9999999
    %v106 = vmin.f32 %v104, 0.9999999
    %v107 = vsub.f32 1.0, %v105
    %v108 = vsub.f32 1.0, %v106
    %v109 = vmul.f32 %v107, %v107
    %v110 = vmul.f32 %v108, %v108
    %v111 = vmul.f32 %v105, %v105
    %v112 = vmul.f32 %v106, %v106
    %v113 = vsub.f32 0.0, %v63
    %v114 = vsub.f32 0.0, %v64
    %v115 = vlog2.pop %v105
    %v116 = vmul.f32 %v115, 0.6931472
    %v117 = vlog2.pop %v106
    %v118 = vmul.f32 %v117, 0.6931472
    %v119 = vmul.f32 %v113, %v116
    %v120 = vmul.f32 %v114, %v118
    %v121 = vmul.f32 %v119, %v109
    %v122 = vmul.f32 %v120, %v110
    %v123 = vmul.f32 %v121, 2.0
    %v124 = vmul.f32 %v122, 2.0
    %v125 = vsub.f32 1.0, %v63
    %v126 = vsub.f32 1.0, %v64
    %v127 = vlog2.pop %v107
    %v128 = vmul.f32 %v127, 0.6931472
    %v129 = vlog2.pop %v108
    %v130 = vmul.f32 %v129, 0.6931472
    %v131 = vmul.f32 %v125, %v128
    %v132 = vmul.f32 %v126, %v130
    %v133 = vmul.f32 %v131, %v111
    %v134 = vmul.f32 %v132, %v112
    %v135 = vsub.f32 %v123, %v133
    %v136 = vsub.f32 %v124, %v134
    %v137 = vld [vmem:[#allocation2] sm:$0xff]
    %v138 = vadd.f32 %v135, %v136
    %v139 = vadd.f32 %v137, %v138
    %140 = vst [vmem:[#allocation2] sm:$0xff] %v139
    // Predicated region
    $region22: #{tpu_custom_call.1} parent=1 // pred_check
      %p141 = pneg %p56
    $region23: #{tpu_custom_call.1} parent=1 // pred_check_branch
      %143 = sbr.rel (%p141) target = $region25
    $region24: #{tpu_custom_call.1} parent=1 // pred_region
      %v144 = vld [vmem:[#allocation2] sm:$0xff]
      %145 = vadd.xlane.f32.xlu0 %v144
      %v146 = vpop.xlane.xlu0 %145
      %v147 = vrot.slane %v146, 4
      %v148 = vadd.f32 %v146, %v147
      %v149 = vrot.slane %v148, 2
      %v150 = vadd.f32 %v148, %v149
      %v151 = vrot.slane %v150, 1
      %v152 = vadd.f32 %v150, %v151
      %s153 = vtos %v152
      %s154 = scalar_lea.smem [#allocation8], 0
      %155 = sst [smem:[%s154]] %s153
    $region25: #{tpu_custom_call.1} parent=1 // pred_fallthru
      _
    // Predicated region
    $region26: #{tpu_custom_call.1} parent=1 // pred_check
      _
    $region27: #{tpu_custom_call.1} parent=1 // pred_check_branch
      %157 = sbr.rel (0) target = $region29
    $region28: #{tpu_custom_call.1} parent=1 // pred_region
      %159 = vsyncadd [#allocation5], 0
      %s161 = sshll.u32 %s2, 4
      %s162 = int_to_ptr.hbm [resolvable:$true] %s161
      %164 = dma.smem_to_hbm [#allocation8], 16, %s162, [#allocation5]
    $region29: #{tpu_custom_call.1} parent=1 // pred_fallthru
      _
    // Predicated region
    $region30: #{tpu_custom_call.1} parent=1 // pred_check
      _
    $region31: #{tpu_custom_call.1} parent=1 // pred_check_branch
      %166 = sbr.rel (0) target = $region33
    $region32: #{tpu_custom_call.1} parent=1 // pred_region
      %168 = dma.done [#allocation5], 16
    $region33: #{tpu_custom_call.1} parent=1 // pred_fallthru
      _
    %169 = sfence
    %170 = vsyncpa [#allocation4], 1
    %171 = vsyncpa [#allocation7], 1
    %172 = vsyncpa [#allocation5], 1

</llo_original>
